<compile_context>
chip_gen: v7x
topology: tpu7x:2x2x1
jax: 0.10.0
libtpu: 0.0.40
codegen_flags: <defaults>
</compile_context>

<pallas_src>
import jax
import jax.numpy as jnp
from jax import lax
from jax.experimental import pallas as pl
from jax.experimental.pallas import tpu as pltpu


def lstm_kernel(x_ref, w_ih_ref, w_hh_ref, b_ref, w_lin_ref, b_lin_ref,
                out_ref, xproj_ref, hseq_ref):
    """Whole-sequence LSTM + output Linear, recurrence in-kernel.

    x_ref:      [T, D_in]   f32
    w_ih_ref:   [D_in, 4H]  f32   (= W_ih^T)
    w_hh_ref:   [H, 4H]     f32   (= W_hh^T)
    b_ref:      [1, 4H]     f32   (= b_ih + b_hh)
    w_lin_ref:  [H, O]      f32   (= W_lin^T)
    b_lin_ref:  [1, O]      f32
    out_ref:    [T, O]      f32
    xproj_ref:  [T, 4H]     f32   VMEM scratch (hoisted input projection)
    hseq_ref:   [T, H]      f32   VMEM scratch (all hidden states)
    """
    T = x_ref.shape[0]
    H = w_hh_ref.shape[0]

    # ---- Hoisted input projection: one M=T matmul instead of T M=1 matmuls ----
    xproj_ref[...] = (
        jnp.dot(x_ref[...], w_ih_ref[...], preferred_element_type=jnp.float32)
        + b_ref[...]
    )

    w_hh = w_hh_ref[...]

    def activations(gates):
        # Activate the full (1, 4H) vreg once per nonlinearity on the EUP,
        # then take static slices (i, f, g, o).
        sig = jax.nn.sigmoid(gates)
        th = jnp.tanh(gates)
        return sig[:, 0:H], sig[:, H:2 * H], th[:, 2 * H:3 * H], sig[:, 3 * H:4 * H]

    # ---- Peeled step t = 0 (h0 = c0 = 0): no recurrent matmul, no f*c term ----
    i_g, _, g_g, o_g = activations(xproj_ref[0:1, :])
    c0 = i_g * g_g
    h0 = o_g * jnp.tanh(c0)
    hseq_ref[0:1, :] = h0

    # ---- Recurrence: only h @ W_hh + elementwise on the serial critical path ----
    def step(t, carry):
        h, c = carry                                     # each (1, H)
        gates = xproj_ref[pl.ds(t, 1), :] + jnp.dot(
            h, w_hh, preferred_element_type=jnp.float32)  # (1, 4H)
        i_g, f_g, g_g, o_g = activations(gates)
        c_new = f_g * c + i_g * g_g
        h_new = o_g * jnp.tanh(c_new)
        hseq_ref[pl.ds(t, 1), :] = h_new
        return h_new, c_new

    lax.fori_loop(1, T, step, (h0, c0), unroll=True)

    # ---- Batched output Linear + one lane/sublane-dense store ----
    out_ref[...] = (
        jnp.dot(hseq_ref[...], w_lin_ref[...], preferred_element_type=jnp.float32)
        + b_lin_ref[...]
    ).astype(out_ref.dtype)


def lstm_forward(input_seq, params):
    """input_seq: [T, D_in] float32 -> predictions [T, O] float32."""
    T = input_seq.shape[0]
    w_ih, w_hh, b_ih, b_hh, w_lin, b_lin = (
        params["w_ih"], params["w_hh"], params["b_ih"],
        params["b_hh"], params["w_lin"], params["b_lin"],
    )
    H = w_hh.shape[1]
    O = w_lin.shape[0]

    # Glue: pre-transpose weights, fold the two LSTM biases together.
    w_ih_t = jnp.asarray(w_ih.T, jnp.float32)                  # (D_in, 4H)
    w_hh_t = jnp.asarray(w_hh.T, jnp.float32)                  # (H, 4H)
    b_gate = jnp.asarray((b_ih + b_hh)[None, :], jnp.float32)  # (1, 4H)
    w_lin_t = jnp.asarray(w_lin.T, jnp.float32)                # (H, O)
    b_lin_r = jnp.asarray(b_lin[None, :], jnp.float32)         # (1, O)

    vmem = pl.BlockSpec(memory_space=pltpu.MemorySpace.VMEM)
    return pl.pallas_call(
        lstm_kernel,
        out_shape=jax.ShapeDtypeStruct((T, O), jnp.float32),
        in_specs=[vmem] * 6,
        out_specs=vmem,
        scratch_shapes=[
            pltpu.VMEM((T, 4 * H), jnp.float32),   # hoisted input projection
            pltpu.VMEM((T, H), jnp.float32),       # all hidden states
        ],
    )(jnp.asarray(input_seq, jnp.float32), w_ih_t, w_hh_t, b_gate, w_lin_t, b_lin_r)


def lstm_reference(input_seq, params):
    """Pure-JAX reference matching PyTorch nn.LSTM + nn.Linear semantics."""
    w_ih, w_hh, b_ih, b_hh, w_lin, b_lin = (
        params["w_ih"], params["w_hh"], params["b_ih"],
        params["b_hh"], params["w_lin"], params["b_lin"],
    )
    H = w_hh.shape[1]
    h = jnp.zeros((H,), jnp.float32)
    c = jnp.zeros((H,), jnp.float32)
    outs = []
    for t in range(input_seq.shape[0]):
        x_t = input_seq[t]
        gates = w_ih @ x_t + b_ih + w_hh @ h + b_hh
        i = jax.nn.sigmoid(gates[0:H])
        f = jax.nn.sigmoid(gates[H:2 * H])
        g = jnp.tanh(gates[2 * H:3 * H])
        o = jax.nn.sigmoid(gates[3 * H:4 * H])
        c = f * c + i * g
        h = o * jnp.tanh(c)
        outs.append(w_lin @ h + b_lin)
    return jnp.stack(outs)


def init_params(key, input_size=4, window_size=1, hidden_size=4, output_size=4):
    """Deterministic init mirroring PyTorch default U(-1/sqrt(H), 1/sqrt(H))."""
    d_in = input_size * window_size
    H = hidden_size
    ks = jax.random.split(key, 6)
    s = 1.0 / jnp.sqrt(jnp.float32(H))
    u = lambda k, shape: jax.random.uniform(k, shape, jnp.float32, -s, s)
    return {
        "w_ih": u(ks[0], (4 * H, d_in)),
        "w_hh": u(ks[1], (4 * H, H)),
        "b_ih": u(ks[2], (4 * H,)),
        "b_hh": u(ks[3], (4 * H,)),
        "w_lin": u(ks[4], (output_size, H)),
        "b_lin": u(ks[5], (output_size,)),
    }


if __name__ == "__main__":
    key = jax.random.PRNGKey(0)
    k_in, k_p = jax.random.split(key)

    input_size, window_size, hidden_size, output_size = 4, 1, 4, 4
    seq_len = 8
    input_seq = jax.random.normal(
        k_in, (seq_len, input_size * window_size), jnp.float32
    )
    params = init_params(k_p, input_size, window_size, hidden_size, output_size)

    out = lstm_forward(input_seq, params)
    out = jax.block_until_ready(out)

    ref = lstm_reference(input_seq, params)
    assert out.shape == (seq_len, output_size)
    assert jnp.allclose(out, ref, atol=1e-5, rtol=1e-5), "mismatch vs reference"

    print("KERNEL_OK")
</pallas_src>

<mosaic_0001>
module attributes {stable_mosaic.version = 11 : i64} {
  func.func @lstm_kernel(%arg0: memref<8x4xf32, #tpu.memory_space<vmem>>, %arg1: memref<4x16xf32, #tpu.memory_space<vmem>>, %arg2: memref<4x16xf32, #tpu.memory_space<vmem>>, %arg3: memref<1x16xf32, #tpu.memory_space<vmem>>, %arg4: memref<4x4xf32, #tpu.memory_space<vmem>>, %arg5: memref<1x4xf32, #tpu.memory_space<vmem>>, %arg6: memref<8x4xf32, #tpu.memory_space<vmem>>, %arg7: memref<8x16xf32, #tpu.memory_space<vmem>>, %arg8: memref<8x4xf32, #tpu.memory_space<vmem>>) attributes {dimension_semantics = [], scalar_prefetch = 0 : i64, scratch_operands = 2 : i64, tpu.core_type = #tpu.core_type<tc>} {
    %c0 = arith.constant 0 : index
    %c0_0 = arith.constant 0 : index
    %0 = vector.load %arg0[%c0, %c0_0] : memref<8x4xf32, #tpu.memory_space<vmem>>, vector<8x4xf32>
    %c0_1 = arith.constant 0 : index
    %c0_2 = arith.constant 0 : index
    %1 = vector.load %arg1[%c0_1, %c0_2] : memref<4x16xf32, #tpu.memory_space<vmem>>, vector<4x16xf32>
    %cst = arith.constant dense<0.000000e+00> : vector<8x16xf32>
    %2 = tpu.matmul %0, %1, %cst {dimension_numbers = #tpu.dot_dimension_numbers<[1], [0], [0], [1], [0, 0, 1, 1], [], []>} : vector<8x4xf32>, vector<4x16xf32>, vector<8x16xf32> -> vector<8x16xf32>
    %c0_3 = arith.constant 0 : index
    %c0_4 = arith.constant 0 : index
    %3 = vector.load %arg3[%c0_3, %c0_4] : memref<1x16xf32, #tpu.memory_space<vmem>>, vector<1x16xf32>
    %4 = vector.broadcast %3 : vector<1x16xf32> to vector<8x16xf32>
    %5 = arith.addf %2, %4 : vector<8x16xf32>
    %c0_5 = arith.constant 0 : index
    %c0_6 = arith.constant 0 : index
    %6 = vector.load %arg7[%c0_5, %c0_6] : memref<8x16xf32, #tpu.memory_space<vmem>>, vector<8x16xf32>
    tpu.vector_store %arg7[%c0_5, %c0_6], %5 {strides = array<i32>} : memref<8x16xf32, #tpu.memory_space<vmem>>, vector<8x16xf32>,
    %c0_7 = arith.constant 0 : index
    %c0_8 = arith.constant 0 : index
    %7 = vector.load %arg2[%c0_7, %c0_8] : memref<4x16xf32, #tpu.memory_space<vmem>>, vector<4x16xf32>
    %c0_9 = arith.constant 0 : index
    %c0_10 = arith.constant 0 : index
    %8 = vector.load %arg7[%c0_9, %c0_10] : memref<8x16xf32, #tpu.memory_space<vmem>>, vector<1x16xf32>
    %9 = arith.negf %8 : vector<1x16xf32>
    %10 = math.exp %9 : vector<1x16xf32>
    %cst_11 = arith.constant 1.000000e+00 : f32
    %11 = vector.broadcast %cst_11 : f32 to vector<1x16xf32>
    %12 = arith.addf %11, %10 : vector<1x16xf32>
    %13 = arith.divf %11, %12 : vector<1x16xf32>
    %14 = math.tanh %8 : vector<1x16xf32>
    %15 = vector.extract_strided_slice %13 {offsets = [0, 0], sizes = [1, 4], strides = [1, 1]} : vector<1x16xf32> to vector<1x4xf32>
    %16 = vector.extract_strided_slice %14 {offsets = [0, 8], sizes = [1, 4], strides = [1, 1]} : vector<1x16xf32> to vector<1x4xf32>
    %17 = vector.extract_strided_slice %13 {offsets = [0, 12], sizes = [1, 4], strides = [1, 1]} : vector<1x16xf32> to vector<1x4xf32>
    %18 = arith.mulf %15, %16 : vector<1x4xf32>
    %19 = math.tanh %18 : vector<1x4xf32>
    %20 = arith.mulf %17, %19 : vector<1x4xf32>
    %c0_12 = arith.constant 0 : index
    %c0_13 = arith.constant 0 : index
    %21 = vector.load %arg8[%c0_12, %c0_13] : memref<8x4xf32, #tpu.memory_space<vmem>>, vector<1x4xf32>
    tpu.vector_store %arg8[%c0_12, %c0_13], %20 {strides = array<i32>} : memref<8x4xf32, #tpu.memory_space<vmem>>, vector<1x4xf32>,
    %c1_i32 = arith.constant 1 : i32
    %22 = arith.index_cast %c1_i32 : i32 to index
    %c0_14 = arith.constant 0 : index
    %23 = vector.load %arg7[%22, %c0_14] : memref<8x16xf32, #tpu.memory_space<vmem>>, vector<1x16xf32>
    %cst_15 = arith.constant dense<0.000000e+00> : vector<1x16xf32>
    %24 = tpu.matmul %20, %7, %cst_15 {dimension_numbers = #tpu.dot_dimension_numbers<[1], [0], [0], [1], [0, 0, 1, 1], [], []>} : vector<1x4xf32>, vector<4x16xf32>, vector<1x16xf32> -> vector<1x16xf32>
    %25 = arith.addf %23, %24 : vector<1x16xf32>
    %26 = arith.negf %25 : vector<1x16xf32>
    %27 = math.exp %26 : vector<1x16xf32>
    %cst_16 = arith.constant 1.000000e+00 : f32
    %28 = vector.broadcast %cst_16 : f32 to vector<1x16xf32>
    %29 = arith.addf %28, %27 : vector<1x16xf32>
    %30 = arith.divf %28, %29 : vector<1x16xf32>
    %31 = math.tanh %25 : vector<1x16xf32>
    %32 = vector.extract_strided_slice %30 {offsets = [0, 0], sizes = [1, 4], strides = [1, 1]} : vector<1x16xf32> to vector<1x4xf32>
    %33 = vector.extract_strided_slice %30 {offsets = [0, 4], sizes = [1, 4], strides = [1, 1]} : vector<1x16xf32> to vector<1x4xf32>
    %34 = vector.extract_strided_slice %31 {offsets = [0, 8], sizes = [1, 4], strides = [1, 1]} : vector<1x16xf32> to vector<1x4xf32>
    %35 = vector.extract_strided_slice %30 {offsets = [0, 12], sizes = [1, 4], strides = [1, 1]} : vector<1x16xf32> to vector<1x4xf32>
    %36 = arith.mulf %33, %18 : vector<1x4xf32>
    %37 = arith.mulf %32, %34 : vector<1x4xf32>
    %38 = arith.addf %36, %37 : vector<1x4xf32>
    %39 = math.tanh %38 : vector<1x4xf32>
    %40 = arith.mulf %35, %39 : vector<1x4xf32>
    %41 = arith.index_cast %c1_i32 : i32 to index
    %c0_17 = arith.constant 0 : index
    %42 = vector.load %arg8[%41, %c0_17] : memref<8x4xf32, #tpu.memory_space<vmem>>, vector<1x4xf32>
    tpu.vector_store %arg8[%41, %c0_17], %40 {strides = array<i32>} : memref<8x4xf32, #tpu.memory_space<vmem>>, vector<1x4xf32>,
    %c2_i32 = arith.constant 2 : i32
    %43 = arith.index_cast %c2_i32 : i32 to index
    %c0_18 = arith.constant 0 : index
    %44 = vector.load %arg7[%43, %c0_18] : memref<8x16xf32, #tpu.memory_space<vmem>>, vector<1x16xf32>
    %cst_19 = arith.constant dense<0.000000e+00> : vector<1x16xf32>
    %45 = tpu.matmul %40, %7, %cst_19 {dimension_numbers = #tpu.dot_dimension_numbers<[1], [0], [0], [1], [0, 0, 1, 1], [], []>} : vector<1x4xf32>, vector<4x16xf32>, vector<1x16xf32> -> vector<1x16xf32>
    %46 = arith.addf %44, %45 : vector<1x16xf32>
    %47 = arith.negf %46 : vector<1x16xf32>
    %48 = math.exp %47 : vector<1x16xf32>
    %cst_20 = arith.constant 1.000000e+00 : f32
    %49 = vector.broadcast %cst_20 : f32 to vector<1x16xf32>
    %50 = arith.addf %49, %48 : vector<1x16xf32>
    %51 = arith.divf %49, %50 : vector<1x16xf32>
    %52 = math.tanh %46 : vector<1x16xf32>
    %53 = vector.extract_strided_slice %51 {offsets = [0, 0], sizes = [1, 4], strides = [1, 1]} : vector<1x16xf32> to vector<1x4xf32>
    %54 = vector.extract_strided_slice %51 {offsets = [0, 4], sizes = [1, 4], strides = [1, 1]} : vector<1x16xf32> to vector<1x4xf32>
    %55 = vector.extract_strided_slice %52 {offsets = [0, 8], sizes = [1, 4], strides = [1, 1]} : vector<1x16xf32> to vector<1x4xf32>
    %56 = vector.extract_strided_slice %51 {offsets = [0, 12], sizes = [1, 4], strides = [1, 1]} : vector<1x16xf32> to vector<1x4xf32>
    %57 = arith.mulf %54, %38 : vector<1x4xf32>
    %58 = arith.mulf %53, %55 : vector<1x4xf32>
    %59 = arith.addf %57, %58 : vector<1x4xf32>
    %60 = math.tanh %59 : vector<1x4xf32>
    %61 = arith.mulf %56, %60 : vector<1x4xf32>
    %62 = arith.index_cast %c2_i32 : i32 to index
    %c0_21 = arith.constant 0 : index
    %63 = vector.load %arg8[%62, %c0_21] : memref<8x4xf32, #tpu.memory_space<vmem>>, vector<1x4xf32>
    tpu.vector_store %arg8[%62, %c0_21], %61 {strides = array<i32>} : memref<8x4xf32, #tpu.memory_space<vmem>>, vector<1x4xf32>,
    %c3_i32 = arith.constant 3 : i32
    %64 = arith.index_cast %c3_i32 : i32 to index
    %c0_22 = arith.constant 0 : index
    %65 = vector.load %arg7[%64, %c0_22] : memref<8x16xf32, #tpu.memory_space<vmem>>, vector<1x16xf32>
    %cst_23 = arith.constant dense<0.000000e+00> : vector<1x16xf32>
    %66 = tpu.matmul %61, %7, %cst_23 {dimension_numbers = #tpu.dot_dimension_numbers<[1], [0], [0], [1], [0, 0, 1, 1], [], []>} : vector<1x4xf32>, vector<4x16xf32>, vector<1x16xf32> -> vector<1x16xf32>
    %67 = arith.addf %65, %66 : vector<1x16xf32>
    %68 = arith.negf %67 : vector<1x16xf32>
    %69 = math.exp %68 : vector<1x16xf32>
    %cst_24 = arith.constant 1.000000e+00 : f32
    %70 = vector.broadcast %cst_24 : f32 to vector<1x16xf32>
    %71 = arith.addf %70, %69 : vector<1x16xf32>
    %72 = arith.divf %70, %71 : vector<1x16xf32>
    %73 = math.tanh %67 : vector<1x16xf32>
    %74 = vector.extract_strided_slice %72 {offsets = [0, 0], sizes = [1, 4], strides = [1, 1]} : vector<1x16xf32> to vector<1x4xf32>
    %75 = vector.extract_strided_slice %72 {offsets = [0, 4], sizes = [1, 4], strides = [1, 1]} : vector<1x16xf32> to vector<1x4xf32>
    %76 = vector.extract_strided_slice %73 {offsets = [0, 8], sizes = [1, 4], strides = [1, 1]} : vector<1x16xf32> to vector<1x4xf32>
    %77 = vector.extract_strided_slice %72 {offsets = [0, 12], sizes = [1, 4], strides = [1, 1]} : vector<1x16xf32> to vector<1x4xf32>
    %78 = arith.mulf %75, %59 : vector<1x4xf32>
    %79 = arith.mulf %74, %76 : vector<1x4xf32>
    %80 = arith.addf %78, %79 : vector<1x4xf32>
    %81 = math.tanh %80 : vector<1x4xf32>
    %82 = arith.mulf %77, %81 : vector<1x4xf32>
    %83 = arith.index_cast %c3_i32 : i32 to index
    %c0_25 = arith.constant 0 : index
    %84 = vector.load %arg8[%83, %c0_25] : memref<8x4xf32, #tpu.memory_space<vmem>>, vector<1x4xf32>
    tpu.vector_store %arg8[%83, %c0_25], %82 {strides = array<i32>} : memref<8x4xf32, #tpu.memory_space<vmem>>, vector<1x4xf32>,
    %c4_i32 = arith.constant 4 : i32
    %85 = arith.index_cast %c4_i32 : i32 to index
    %c0_26 = arith.constant 0 : index
    %86 = vector.load %arg7[%85, %c0_26] : memref<8x16xf32, #tpu.memory_space<vmem>>, vector<1x16xf32>
    %cst_27 = arith.constant dense<0.000000e+00> : vector<1x16xf32>
    %87 = tpu.matmul %82, %7, %cst_27 {dimension_numbers = #tpu.dot_dimension_numbers<[1], [0], [0], [1], [0, 0, 1, 1], [], []>} : vector<1x4xf32>, vector<4x16xf32>, vector<1x16xf32> -> vector<1x16xf32>
    %88 = arith.addf %86, %87 : vector<1x16xf32>
    %89 = arith.negf %88 : vector<1x16xf32>
    %90 = math.exp %89 : vector<1x16xf32>
    %cst_28 = arith.constant 1.000000e+00 : f32
    %91 = vector.broadcast %cst_28 : f32 to vector<1x16xf32>
    %92 = arith.addf %91, %90 : vector<1x16xf32>
    %93 = arith.divf %91, %92 : vector<1x16xf32>
    %94 = math.tanh %88 : vector<1x16xf32>
    %95 = vector.extract_strided_slice %93 {offsets = [0, 0], sizes = [1, 4], strides = [1, 1]} : vector<1x16xf32> to vector<1x4xf32>
    %96 = vector.extract_strided_slice %93 {offsets = [0, 4], sizes = [1, 4], strides = [1, 1]} : vector<1x16xf32> to vector<1x4xf32>
    %97 = vector.extract_strided_slice %94 {offsets = [0, 8], sizes = [1, 4], strides = [1, 1]} : vector<1x16xf32> to vector<1x4xf32>
    %98 = vector.extract_strided_slice %93 {offsets = [0, 12], sizes = [1, 4], strides = [1, 1]} : vector<1x16xf32> to vector<1x4xf32>
    %99 = arith.mulf %96, %80 : vector<1x4xf32>
    %100 = arith.mulf %95, %97 : vector<1x4xf32>
    %101 = arith.addf %99, %100 : vector<1x4xf32>
    %102 = math.tanh %101 : vector<1x4xf32>
    %103 = arith.mulf %98, %102 : vector<1x4xf32>
    %104 = arith.index_cast %c4_i32 : i32 to index
    %c0_29 = arith.constant 0 : index
    %105 = vector.load %arg8[%104, %c0_29] : memref<8x4xf32, #tpu.memory_space<vmem>>, vector<1x4xf32>
    tpu.vector_store %arg8[%104, %c0_29], %103 {strides = array<i32>} : memref<8x4xf32, #tpu.memory_space<vmem>>, vector<1x4xf32>,
    %c5_i32 = arith.constant 5 : i32
    %106 = arith.index_cast %c5_i32 : i32 to index
    %c0_30 = arith.constant 0 : index
    %107 = vector.load %arg7[%106, %c0_30] : memref<8x16xf32, #tpu.memory_space<vmem>>, vector<1x16xf32>
    %cst_31 = arith.constant dense<0.000000e+00> : vector<1x16xf32>
    %108 = tpu.matmul %103, %7, %cst_31 {dimension_numbers = #tpu.dot_dimension_numbers<[1], [0], [0], [1], [0, 0, 1, 1], [], []>} : vector<1x4xf32>, vector<4x16xf32>, vector<1x16xf32> -> vector<1x16xf32>
    %109 = arith.addf %107, %108 : vector<1x16xf32>
    %110 = arith.negf %109 : vector<1x16xf32>
    %111 = math.exp %110 : vector<1x16xf32>
    %cst_32 = arith.constant 1.000000e+00 : f32
    %112 = vector.broadcast %cst_32 : f32 to vector<1x16xf32>
    %113 = arith.addf %112, %111 : vector<1x16xf32>
    %114 = arith.divf %112, %113 : vector<1x16xf32>
    %115 = math.tanh %109 : vector<1x16xf32>
    %116 = vector.extract_strided_slice %114 {offsets = [0, 0], sizes = [1, 4], strides = [1, 1]} : vector<1x16xf32> to vector<1x4xf32>
    %117 = vector.extract_strided_slice %114 {offsets = [0, 4], sizes = [1, 4], strides = [1, 1]} : vector<1x16xf32> to vector<1x4xf32>
    %118 = vector.extract_strided_slice %115 {offsets = [0, 8], sizes = [1, 4], strides = [1, 1]} : vector<1x16xf32> to vector<1x4xf32>
    %119 = vector.extract_strided_slice %114 {offsets = [0, 12], sizes = [1, 4], strides = [1, 1]} : vector<1x16xf32> to vector<1x4xf32>
    %120 = arith.mulf %117, %101 : vector<1x4xf32>
    %121 = arith.mulf %116, %118 : vector<1x4xf32>
    %122 = arith.addf %120, %121 : vector<1x4xf32>
    %123 = math.tanh %122 : vector<1x4xf32>
    %124 = arith.mulf %119, %123 : vector<1x4xf32>
    %125 = arith.index_cast %c5_i32 : i32 to index
    %c0_33 = arith.constant 0 : index
    %126 = vector.load %arg8[%125, %c0_33] : memref<8x4xf32, #tpu.memory_space<vmem>>, vector<1x4xf32>
    tpu.vector_store %arg8[%125, %c0_33], %124 {strides = array<i32>} : memref<8x4xf32, #tpu.memory_space<vmem>>, vector<1x4xf32>,
    %c6_i32 = arith.constant 6 : i32
    %127 = arith.index_cast %c6_i32 : i32 to index
    %c0_34 = arith.constant 0 : index
    %128 = vector.load %arg7[%127, %c0_34] : memref<8x16xf32, #tpu.memory_space<vmem>>, vector<1x16xf32>
    %cst_35 = arith.constant dense<0.000000e+00> : vector<1x16xf32>
    %129 = tpu.matmul %124, %7, %cst_35 {dimension_numbers = #tpu.dot_dimension_numbers<[1], [0], [0], [1], [0, 0, 1, 1], [], []>} : vector<1x4xf32>, vector<4x16xf32>, vector<1x16xf32> -> vector<1x16xf32>
    %130 = arith.addf %128, %129 : vector<1x16xf32>
    %131 = arith.negf %130 : vector<1x16xf32>
    %132 = math.exp %131 : vector<1x16xf32>
    %cst_36 = arith.constant 1.000000e+00 : f32
    %133 = vector.broadcast %cst_36 : f32 to vector<1x16xf32>
    %134 = arith.addf %133, %132 : vector<1x16xf32>
    %135 = arith.divf %133, %134 : vector<1x16xf32>
    %136 = math.tanh %130 : vector<1x16xf32>
    %137 = vector.extract_strided_slice %135 {offsets = [0, 0], sizes = [1, 4], strides = [1, 1]} : vector<1x16xf32> to vector<1x4xf32>
    %138 = vector.extract_strided_slice %135 {offsets = [0, 4], sizes = [1, 4], strides = [1, 1]} : vector<1x16xf32> to vector<1x4xf32>
    %139 = vector.extract_strided_slice %136 {offsets = [0, 8], sizes = [1, 4], strides = [1, 1]} : vector<1x16xf32> to vector<1x4xf32>
    %140 = vector.extract_strided_slice %135 {offsets = [0, 12], sizes = [1, 4], strides = [1, 1]} : vector<1x16xf32> to vector<1x4xf32>
    %141 = arith.mulf %138, %122 : vector<1x4xf32>
    %142 = arith.mulf %137, %139 : vector<1x4xf32>
    %143 = arith.addf %141, %142 : vector<1x4xf32>
    %144 = math.tanh %143 : vector<1x4xf32>
    %145 = arith.mulf %140, %144 : vector<1x4xf32>
    %146 = arith.index_cast %c6_i32 : i32 to index
    %c0_37 = arith.constant 0 : index
    %147 = vector.load %arg8[%146, %c0_37] : memref<8x4xf32, #tpu.memory_space<vmem>>, vector<1x4xf32>
    tpu.vector_store %arg8[%146, %c0_37], %145 {strides = array<i32>} : memref<8x4xf32, #tpu.memory_space<vmem>>, vector<1x4xf32>,
    %c7_i32 = arith.constant 7 : i32
    %148 = arith.index_cast %c7_i32 : i32 to index
    %c0_38 = arith.constant 0 : index
    %149 = vector.load %arg7[%148, %c0_38] : memref<8x16xf32, #tpu.memory_space<vmem>>, vector<1x16xf32>
    %cst_39 = arith.constant dense<0.000000e+00> : vector<1x16xf32>
    %150 = tpu.matmul %145, %7, %cst_39 {dimension_numbers = #tpu.dot_dimension_numbers<[1], [0], [0], [1], [0, 0, 1, 1], [], []>} : vector<1x4xf32>, vector<4x16xf32>, vector<1x16xf32> -> vector<1x16xf32>
    %151 = arith.addf %149, %150 : vector<1x16xf32>
    %152 = arith.negf %151 : vector<1x16xf32>
    %153 = math.exp %152 : vector<1x16xf32>
    %cst_40 = arith.constant 1.000000e+00 : f32
    %154 = vector.broadcast %cst_40 : f32 to vector<1x16xf32>
    %155 = arith.addf %154, %153 : vector<1x16xf32>
    %156 = arith.divf %154, %155 : vector<1x16xf32>
    %157 = math.tanh %151 : vector<1x16xf32>
    %158 = vector.extract_strided_slice %156 {offsets = [0, 0], sizes = [1, 4], strides = [1, 1]} : vector<1x16xf32> to vector<1x4xf32>
    %159 = vector.extract_strided_slice %156 {offsets = [0, 4], sizes = [1, 4], strides = [1, 1]} : vector<1x16xf32> to vector<1x4xf32>
    %160 = vector.extract_strided_slice %157 {offsets = [0, 8], sizes = [1, 4], strides = [1, 1]} : vector<1x16xf32> to vector<1x4xf32>
    %161 = vector.extract_strided_slice %156 {offsets = [0, 12], sizes = [1, 4], strides = [1, 1]} : vector<1x16xf32> to vector<1x4xf32>
    %162 = arith.mulf %159, %143 : vector<1x4xf32>
    %163 = arith.mulf %158, %160 : vector<1x4xf32>
    %164 = arith.addf %162, %163 : vector<1x4xf32>
    %165 = math.tanh %164 : vector<1x4xf32>
    %166 = arith.mulf %161, %165 : vector<1x4xf32>
    %167 = arith.index_cast %c7_i32 : i32 to index
    %c0_41 = arith.constant 0 : index
    %168 = vector.load %arg8[%167, %c0_41] : memref<8x4xf32, #tpu.memory_space<vmem>>, vector<1x4xf32>
    tpu.vector_store %arg8[%167, %c0_41], %166 {strides = array<i32>} : memref<8x4xf32, #tpu.memory_space<vmem>>, vector<1x4xf32>,
    %c7_i32_42 = arith.constant 7 : i32
    %c0_43 = arith.constant 0 : index
    %c0_44 = arith.constant 0 : index
    %169 = vector.load %arg8[%c0_43, %c0_44] : memref<8x4xf32, #tpu.memory_space<vmem>>, vector<8x4xf32>
    %c0_45 = arith.constant 0 : index
    %c0_46 = arith.constant 0 : index
    %170 = vector.load %arg4[%c0_45, %c0_46] : memref<4x4xf32, #tpu.memory_space<vmem>>, vector<4x4xf32>
    %cst_47 = arith.constant dense<0.000000e+00> : vector<8x4xf32>
    %171 = tpu.matmul %169, %170, %cst_47 {dimension_numbers = #tpu.dot_dimension_numbers<[1], [0], [0], [1], [0, 0, 1, 1], [], []>} : vector<8x4xf32>, vector<4x4xf32>, vector<8x4xf32> -> vector<8x4xf32>
    %c0_48 = arith.constant 0 : index
    %c0_49 = arith.constant 0 : index
    %172 = vector.load %arg5[%c0_48, %c0_49] : memref<1x4xf32, #tpu.memory_space<vmem>>, vector<1x4xf32>
    %173 = vector.broadcast %172 : vector<1x4xf32> to vector<8x4xf32>
    %174 = arith.addf %171, %173 : vector<8x4xf32>
    %c0_50 = arith.constant 0 : index
    %c0_51 = arith.constant 0 : index
    %175 = vector.load %arg6[%c0_50, %c0_51] : memref<8x4xf32, #tpu.memory_space<vmem>>, vector<8x4xf32>
    tpu.vector_store %arg6[%c0_50, %c0_51], %174 {strides = array<i32>} : memref<8x4xf32, #tpu.memory_space<vmem>>, vector<8x4xf32>,
    return
  }
}

</mosaic_0001>

<llo_original>
// kernel: tpu_custom_call.1
$region0: #{tpu_custom_call.1}
  #allocation0 [shape = 'u32[]', space=smem, size = 0x4, offset = 0x4, fixed_abs, tag = 'smem constant byte address 0x4 - core index']
  #allocation1 [shape = 'u32[144,128]{1,0:T(1,128)}', space=vmem, size = 0x12000, scoped, tag = 'internal scratch']
  #allocation2 [shape = 'f32[8,16]{1,0:T(8,128)}', space=vmem, size = 0x1000, scoped, tag = 'scratch operand']
  #allocation3 [shape = 'f32[8,4]{1,0:T(8,128)}', space=vmem, size = 0x1000, scoped, tag = 'scratch operand']
  %s0 = inlined_call_operand.vmem [shape: f32[8,4], index: 0, kind: input, shape index: {}]
  %s1 = inlined_call_operand.vmem [shape: f32[4,16], index: 1, kind: input, shape index: {}]
  %s2 = inlined_call_operand.vmem [shape: f32[4,16], index: 2, kind: input, shape index: {}]
  %s3 = inlined_call_operand.vmem [shape: f32[1,16], index: 3, kind: input, shape index: {}]
  %s4 = inlined_call_operand.vmem [shape: f32[4,4], index: 4, kind: input, shape index: {}]
  %s5 = inlined_call_operand.vmem [shape: f32[1,4], index: 5, kind: input, shape index: {}]
  %s6 = inlined_call_operand.vmem [shape: f32[8,4], index: 6, kind: output, shape index: {}]
  %s7 = sld [smem:[#allocation0]]
  $region34: #{tpu_custom_call.1} parent=0
    _
  %s9 = ssub.s32 1, %s7
  %s10 = scalar_select 0, %s9, %s7
  // Predicated region
  $region2: #{tpu_custom_call.1} parent=0 // pred_check
    _
  $region3: #{tpu_custom_call.1} parent=0 // pred_check_branch
    %12 = sbr.rel (0) target = $region5
  $region4: #{tpu_custom_call.1} parent=0 // pred_region
    _
  $region5: #{tpu_custom_call.1} parent=0 // pred_fallthru
    _
  // Predicated region
  $region6: #{tpu_custom_call.1} parent=0 // pred_check
    _
  $region7: #{tpu_custom_call.1} parent=0 // pred_check_branch
    %14 = sbr.rel (0) target = $region9
  $region8: #{tpu_custom_call.1} parent=0 // pred_region
    _
  $region9: #{tpu_custom_call.1} parent=0 // pred_fallthru
    _
  // Predicated region
  $region10: #{tpu_custom_call.1} parent=0 // pred_check
    _
  $region11: #{tpu_custom_call.1} parent=0 // pred_check_branch
    %16 = sbr.rel (0) target = $region13
  $region12: #{tpu_custom_call.1} parent=0 // pred_region
    _
  $region13: #{tpu_custom_call.1} parent=0 // pred_fallthru
    _
  // Predicated region
  $region14: #{tpu_custom_call.1} parent=0 // pred_check
    _
  $region15: #{tpu_custom_call.1} parent=0 // pred_check_branch
    %18 = sbr.rel (0) target = $region17
  $region16: #{tpu_custom_call.1} parent=0 // pred_region
    _
  $region17: #{tpu_custom_call.1} parent=0 // pred_fallthru
    _
  // Predicated region
  $region18: #{tpu_custom_call.1} parent=0 // pred_check
    _
  $region19: #{tpu_custom_call.1} parent=0 // pred_check_branch
    %20 = sbr.rel (0) target = $region21
  $region20: #{tpu_custom_call.1} parent=0 // pred_region
    _
  $region21: #{tpu_custom_call.1} parent=0 // pred_fallthru
    _
  // Predicated region
  $region22: #{tpu_custom_call.1} parent=0 // pred_check
    _
  $region23: #{tpu_custom_call.1} parent=0 // pred_check_branch
    %22 = sbr.rel (0) target = $region25
  $region24: #{tpu_custom_call.1} parent=0 // pred_region
    _
  $region25: #{tpu_custom_call.1} parent=0 // pred_fallthru
    _
  %v23 = vld [vmem:[%s0] sm:$0xff]
  %v24 = vld [vmem:[%s1] sm:$0xf]
  %v25 = vld [vmem:[%s3] sm:$0x1]
  %v27 = vlaneseq
  %v28 = vshrl.u32 %v27, 7
  %v29 = vsub.s32 0, %v28
  %v30 = vrot.slane %v25, %v29
  %vm32 = vcmask 31744
  %v34 = vsel %vm32, %v23, 0
  %vm36 = vcmask 1043456
  %v38 = vsel %vm36, %v24, 0
  %40 = vmatprep.subr.mxu0 0.0
  %41 = vmatpush1.msra.mxu0 %v38
  %42 = vmatprep.subr.mxu0 0.0
  %43 = vmatpush1.msra.mxu0 0.0
  %44 = vmatprep.subr.mxu0 0.0
  %45 = vmatpush1.msra.mxu0 0.0
  %46 = vmatprep.subr.mxu0 0.0
  %47 = vmatpush1.msra.mxu0 0.0
  %48 = vmatprep.subr.mxu0 0.0
  %49 = vmatpush1.msra.mxu0 0.0
  %50 = vmatprep.subr.mxu0 0.0
  %51 = vmatpush1.msra.mxu0 0.0
  %52 = vmatprep.subr.mxu0 0.0
  %53 = vmatpush1.msra.mxu0 0.0
  %54 = vmatprep.subr.mxu0 0.0
  %55 = vmatpush1.msra.mxu0 0.0
  %56 = vmatprep.subr.mxu0 0.0
  %57 = vmatpush1.msra.mxu0 0.0
  %58 = vmatprep.subr.mxu0 0.0
  %59 = vmatpush1.msra.mxu0 0.0
  %60 = vmatprep.subr.mxu0 0.0
  %61 = vmatpush1.msra.mxu0 0.0
  %62 = vmatprep.subr.mxu0 0.0
  %63 = vmatpush1.msra.mxu0 0.0
  %64 = vmatprep.subr.mxu0 0.0
  %65 = vmatpush1.msra.mxu0 0.0
  %66 = vmatprep.subr.mxu0 0.0
  %67 = vmatpush1.msra.mxu0 0.0
  %68 = vmatprep.subr.mxu0 0.0
  %69 = vmatpush1.msra.mxu0 0.0
  %70 = vmatprep.subr.mxu0 0.0
  %71 = vmatpush1.msra.mxu0 0.0
  %72 = vmatprep.subr.mxu0 0.0
  %73 = vmatpush1.msra.mxu0 0.0
  %74 = vmatprep.subr.mxu0 0.0
  %75 = vmatpush1.msra.mxu0 0.0
  %76 = vmatprep.subr.mxu0 0.0
  %77 = vmatpush1.msra.mxu0 0.0
  %78 = vmatprep.subr.mxu0 0.0
  %79 = vmatpush1.msra.mxu0 0.0
  %80 = vmatprep.subr.mxu0 0.0
  %81 = vmatpush1.msra.mxu0 0.0
  %82 = vmatprep.subr.mxu0 0.0
  %83 = vmatpush1.msra.mxu0 0.0
  %84 = vmatprep.subr.mxu0 0.0
  %85 = vmatpush1.msra.mxu0 0.0
  %86 = vmatprep.subr.mxu0 0.0
  %87 = vmatpush1.msra.mxu0 0.0
  %88 = vmatprep.subr.mxu0 0.0
  %89 = vmatpush1.msra.mxu0 0.0
  %90 = vmatprep.subr.mxu0 0.0
  %91 = vmatpush1.msra.mxu0 0.0
  %92 = vmatprep.subr.mxu0 0.0
  %93 = vmatpush1.msra.mxu0 0.0
  %94 = vmatprep.subr.mxu0 0.0
  %95 = vmatpush1.msra.mxu0 0.0
  %96 = vmatprep.subr.mxu0 0.0
  %97 = vmatpush1.msra.mxu0 0.0
  %98 = vmatprep.subr.mxu0 0.0
  %99 = vmatpush1.msra.mxu0 0.0
  %100 = vmatprep.subr.mxu0 0.0
  %101 = vmatpush1.msra.mxu0 0.0
  %102 = vmatprep.subr.mxu0 0.0
  %103 = vmatpush1.msra.mxu0 0.0
  %104 = vmatprep.mubr.f32.mxu0 0.0
  %105 = vmatmul.mubr.f32.gmra.mrb[0].mxu0 %v34
  %v106 = vpop.f32.mrb[0].mxu0
  %v107 = vadd.f32 %v30, %v106
  %v108 = vpop.f32.mrb[0].mxu0
  %109 = vdwg.mxu0
  %vm110 = vcmask 130048
  %111 = vst.msk [vmem:[#allocation2] sm:$0xff] %vm110, %v107
  %v112 = vld [vmem:[%s2] sm:$0xf]
  %v113 = vld [vmem:[#allocation2] sm:$0x1]
  %v114 = vxor.u32 %v113, 2147483648
  %v115 = vmul.f32 %v114, 1.442695
  %v116 = vpow.pop %v115
  %v117 = vadd.f32 %v116, 1.0
  %v118 = vrcp.pop %v117
  %v119 = vmul.f32 1.0, %v118
  %v120 = vtanh.pop %v113
  %122 = vrot.lane.b32.xlu0 %v120, 120
  %v123 = vpop.permute.xlu0 %122
  %v125 = vmul.f32 %v119, %v123
  %v126 = vtanh.pop %v125
  %128 = vrot.lane.b32.xlu0 %v126, 12
  %v129 = vpop.permute.xlu0 %128
  %v131 = vmul.f32 %v119, %v129
  %133 = vrot.lane.b32.xlu0 %v131, 116
  %v134 = vpop.permute.xlu0 %133
  %vm136 = vcmask 24576
  %137 = vst.msk [vmem:[#allocation3] sm:$0x1] %vm136, %v134
  %v138 = vld [vmem:[#allocation2 + $0x1] sm:$0x1]
  %v139 = vsel %vm32, %v134, 0
  %v142 = vsel %vm36, %v112, 0
  %144 = vmatprep.subr.mxu0 0.0
  %145 = vmatpush1.msra.mxu0 %v142
  %146 = vmatprep.subr.mxu0 0.0
  %147 = vmatpush1.msra.mxu0 0.0
  %148 = vmatprep.subr.mxu0 0.0
  %149 = vmatpush1.msra.mxu0 0.0
  %150 = vmatprep.subr.mxu0 0.0
  %151 = vmatpush1.msra.mxu0 0.0
  %152 = vmatprep.subr.mxu0 0.0
  %153 = vmatpush1.msra.mxu0 0.0
  %154 = vmatprep.subr.mxu0 0.0
  %155 = vmatpush1.msra.mxu0 0.0
  %156 = vmatprep.subr.mxu0 0.0
  %157 = vmatpush1.msra.mxu0 0.0
  %158 = vmatprep.subr.mxu0 0.0
  %159 = vmatpush1.msra.mxu0 0.0
  %160 = vmatprep.subr.mxu0 0.0
  %161 = vmatpush1.msra.mxu0 0.0
  %162 = vmatprep.subr.mxu0 0.0
  %163 = vmatpush1.msra.mxu0 0.0
  %164 = vmatprep.subr.mxu0 0.0
  %165 = vmatpush1.msra.mxu0 0.0
  %166 = vmatprep.subr.mxu0 0.0
  %167 = vmatpush1.msra.mxu0 0.0
  %168 = vmatprep.subr.mxu0 0.0
  %169 = vmatpush1.msra.mxu0 0.0
  %170 = vmatprep.subr.mxu0 0.0
  %171 = vmatpush1.msra.mxu0 0.0
  %172 = vmatprep.subr.mxu0 0.0
  %173 = vmatpush1.msra.mxu0 0.0
  %174 = vmatprep.subr.mxu0 0.0
  %175 = vmatpush1.msra.mxu0 0.0
  %176 = vmatprep.subr.mxu0 0.0
  %177 = vmatpush1.msra.mxu0 0.0
  %178 = vmatprep.subr.mxu0 0.0
  %179 = vmatpush1.msra.mxu0 0.0
  %180 = vmatprep.subr.mxu0 0.0
  %181 = vmatpush1.msra.mxu0 0.0
  %182 = vmatprep.subr.mxu0 0.0
  %183 = vmatpush1.msra.mxu0 0.0
  %184 = vmatprep.subr.mxu0 0.0
  %185 = vmatpush1.msra.mxu0 0.0
  %186 = vmatprep.subr.mxu0 0.0
  %187 = vmatpush1.msra.mxu0 0.0
  %188 = vmatprep.subr.mxu0 0.0
  %189 = vmatpush1.msra.mxu0 0.0
  %190 = vmatprep.subr.mxu0 0.0
  %191 = vmatpush1.msra.mxu0 0.0
  %192 = vmatprep.subr.mxu0 0.0
  %193 = vmatpush1.msra.mxu0 0.0
  %194 = vmatprep.subr.mxu0 0.0
  %195 = vmatpush1.msra.mxu0 0.0
  %196 = vmatprep.subr.mxu0 0.0
  %197 = vmatpush1.msra.mxu0 0.0
  %198 = vmatprep.subr.mxu0 0.0
  %199 = vmatpush1.msra.mxu0 0.0
  %200 = vmatprep.subr.mxu0 0.0
  %201 = vmatpush1.msra.mxu0 0.0
  %202 = vmatprep.subr.mxu0 0.0
  %203 = vmatpush1.msra.mxu0 0.0
  %204 = vmatprep.subr.mxu0 0.0
  %205 = vmatpush1.msra.mxu0 0.0
  %206 = vmatprep.subr.mxu0 0.0
  %207 = vmatpush1.msra.mxu0 0.0
  %208 = vmatprep.mubr.f32.mxu0 0.0
  %209 = vmatmul.mubr.f32.gmra.mrb[0].mxu0 %v139
  %v210 = vpop.f32.mrb[0].mxu0
  %v211 = vadd.f32 0.0, %v210
  %v212 = vpop.f32.mrb[0].mxu0
  %213 = vdwg.mxu0
  %v214 = vadd.f32 %v138, %v211
  %v215 = vxor.u32 %v214, 2147483648
  %v216 = vmul.f32 %v215, 1.442695
  %v217 = vpow.pop %v216
  %v218 = vadd.f32 %v217, 1.0
  %v219 = vrcp.pop %v218
  %v220 = vmul.f32 1.0, %v219
  %v221 = vtanh.pop %v214
  %223 = vrot.lane.b32.xlu0 %v125, 4
  %v224 = vpop.permute.xlu0 %223
  %v226 = vmul.f32 %v220, %v224
  %228 = vrot.lane.b32.xlu0 %v221, 120
  %v229 = vpop.permute.xlu0 %228
  %v231 = vmul.f32 %v220, %v229
  %233 = vrot.lane.b32.xlu0 %v231, 4
  %v234 = vpop.permute.xlu0 %233
  %v236 = vadd.f32 %v226, %v234
  %v237 = vtanh.pop %v236
  %239 = vrot.lane.b32.xlu0 %v237, 8
  %v240 = vpop.permute.xlu0 %239
  %v242 = vmul.f32 %v220, %v240
  %244 = vrot.lane.b32.xlu0 %v242, 116
  %v245 = vpop.permute.xlu0 %244
  %247 = vst.msk [vmem:[#allocation3 + $0x1] sm:$0x1] %vm136, %v245
  %v248 = vld [vmem:[#allocation2 + $0x2] sm:$0x1]
  %v249 = vsel %vm32, %v245, 0
  %251 = vmatprep.subr.mxu0 0.0
  %252 = vmatpush1.msra.mxu0 %v142
  %253 = vmatprep.subr.mxu0 0.0
  %254 = vmatpush1.msra.mxu0 0.0
  %255 = vmatprep.subr.mxu0 0.0
  %256 = vmatpush1.msra.mxu0 0.0
  %257 = vmatprep.subr.mxu0 0.0
  %258 = vmatpush1.msra.mxu0 0.0
  %259 = vmatprep.subr.mxu0 0.0
  %260 = vmatpush1.msra.mxu0 0.0
  %261 = vmatprep.subr.mxu0 0.0
  %262 = vmatpush1.msra.mxu0 0.0
  %263 = vmatprep.subr.mxu0 0.0
  %264 = vmatpush1.msra.mxu0 0.0
  %265 = vmatprep.subr.mxu0 0.0
  %266 = vmatpush1.msra.mxu0 0.0
  %267 = vmatprep.subr.mxu0 0.0
  %268 = vmatpush1.msra.mxu0 0.0
  %269 = vmatprep.subr.mxu0 0.0
  %270 = vmatpush1.msra.mxu0 0.0
  %271 = vmatprep.subr.mxu0 0.0
  %272 = vmatpush1.msra.mxu0 0.0
  %273 = vmatprep.subr.mxu0 0.0
  %274 = vmatpush1.msra.mxu0 0.0
  %275 = vmatprep.subr.mxu0 0.0
  %276 = vmatpush1.msra.mxu0 0.0
  %277 = vmatprep.subr.mxu0 0.0
  %278 = vmatpush1.msra.mxu0 0.0
  %279 = vmatprep.subr.mxu0 0.0
  %280 = vmatpush1.msra.mxu0 0.0
  %281 = vmatprep.subr.mxu0 0.0
  %282 = vmatpush1.msra.mxu0 0.0
  %283 = vmatprep.subr.mxu0 0.0
  %284 = vmatpush1.msra.mxu0 0.0
  %285 = vmatprep.subr.mxu0 0.0
  %286 = vmatpush1.msra.mxu0 0.0
  %287 = vmatprep.subr.mxu0 0.0
  %288 = vmatpush1.msra.mxu0 0.0
  %289 = vmatprep.subr.mxu0 0.0
  %290 = vmatpush1.msra.mxu0 0.0
  %291 = vmatprep.subr.mxu0 0.0
  %292 = vmatpush1.msra.mxu0 0.0
  %293 = vmatprep.subr.mxu0 0.0
  %294 = vmatpush1.msra.mxu0 0.0
  %295 = vmatprep.subr.mxu0 0.0
  %296 = vmatpush1.msra.mxu0 0.0
  %297 = vmatprep.subr.mxu0 0.0
  %298 = vmatpush1.msra.mxu0 0.0
  %299 = vmatprep.subr.mxu0 0.0
  %300 = vmatpush1.msra.mxu0 0.0
  %301 = vmatprep.subr.mxu0 0.0
  %302 = vmatpush1.msra.mxu0 0.0
  %303 = vmatprep.subr.mxu0 0.0
  %304 = vmatpush1.msra.mxu0 0.0
  %305 = vmatprep.subr.mxu0 0.0
  %306 = vmatpush1.msra.mxu0 0.0
  %307 = vmatprep.subr.mxu0 0.0
  %308 = vmatpush1.msra.mxu0 0.0
  %309 = vmatprep.subr.mxu0 0.0
  %310 = vmatpush1.msra.mxu0 0.0
  %311 = vmatprep.subr.mxu0 0.0
  %312 = vmatpush1.msra.mxu0 0.0
  %313 = vmatprep.subr.mxu0 0.0
  %314 = vmatpush1.msra.mxu0 0.0
  %315 = vmatprep.mubr.f32.mxu0 0.0
  %316 = vmatmul.mubr.f32.gmra.mrb[0].mxu0 %v249
  %v317 = vpop.f32.mrb[0].mxu0
  %v318 = vadd.f32 0.0, %v317
  %v319 = vpop.f32.mrb[0].mxu0
  %320 = vdwg.mxu0
  %v321 = vadd.f32 %v248, %v318
  %v322 = vxor.u32 %v321, 2147483648
  %v323 = vmul.f32 %v322, 1.442695
  %v324 = vpow.pop %v323
  %v325 = vadd.f32 %v324, 1.0
  %v326 = vrcp.pop %v325
  %v327 = vmul.f32 1.0, %v326
  %v328 = vtanh.pop %v321
  %v329 = vmul.f32 %v327, %v236
  %331 = vrot.lane.b32.xlu0 %v328, 120
  %v332 = vpop.permute.xlu0 %331
  %v334 = vmul.f32 %v327, %v332
  %336 = vrot.lane.b32.xlu0 %v334, 4
  %v337 = vpop.permute.xlu0 %336
  %v339 = vadd.f32 %v329, %v337
  %v340 = vtanh.pop %v339
  %342 = vrot.lane.b32.xlu0 %v340, 8
  %v343 = vpop.permute.xlu0 %342
  %v345 = vmul.f32 %v327, %v343
  %347 = vrot.lane.b32.xlu0 %v345, 116
  %v348 = vpop.permute.xlu0 %347
  %350 = vst.msk [vmem:[#allocation3 + $0x2] sm:$0x1] %vm136, %v348
  %v351 = vld [vmem:[#allocation2 + $0x3] sm:$0x1]
  %v352 = vsel %vm32, %v348, 0
  %354 = vmatprep.subr.mxu0 0.0
  %355 = vmatpush1.msra.mxu0 %v142
  %356 = vmatprep.subr.mxu0 0.0
  %357 = vmatpush1.msra.mxu0 0.0
  %358 = vmatprep.subr.mxu0 0.0
  %359 = vmatpush1.msra.mxu0 0.0
  %360 = vmatprep.subr.mxu0 0.0
  %361 = vmatpush1.msra.mxu0 0.0
  %362 = vmatprep.subr.mxu0 0.0
  %363 = vmatpush1.msra.mxu0 0.0
  %364 = vmatprep.subr.mxu0 0.0
  %365 = vmatpush1.msra.mxu0 0.0
  %366 = vmatprep.subr.mxu0 0.0
  %367 = vmatpush1.msra.mxu0 0.0
  %368 = vmatprep.subr.mxu0 0.0
  %369 = vmatpush1.msra.mxu0 0.0
  %370 = vmatprep.subr.mxu0 0.0
  %371 = vmatpush1.msra.mxu0 0.0
  %372 = vmatprep.subr.mxu0 0.0
  %373 = vmatpush1.msra.mxu0 0.0
  %374 = vmatprep.subr.mxu0 0.0
  %375 = vmatpush1.msra.mxu0 0.0
  %376 = vmatprep.subr.mxu0 0.0
  %377 = vmatpush1.msra.mxu0 0.0
  %378 = vmatprep.subr.mxu0 0.0
  %379 = vmatpush1.msra.mxu0 0.0
  %380 = vmatprep.subr.mxu0 0.0
  %381 = vmatpush1.msra.mxu0 0.0
  %382 = vmatprep.subr.mxu0 0.0
  %383 = vmatpush1.msra.mxu0 0.0
  %384 = vmatprep.subr.mxu0 0.0
  %385 = vmatpush1.msra.mxu0 0.0
  %386 = vmatprep.subr.mxu0 0.0
  %387 = vmatpush1.msra.mxu0 0.0
  %388 = vmatprep.subr.mxu0 0.0
  %389 = vmatpush1.msra.mxu0 0.0
  %390 = vmatprep.subr.mxu0 0.0
  %391 = vmatpush1.msra.mxu0 0.0
  %392 = vmatprep.subr.mxu0 0.0
  %393 = vmatpush1.msra.mxu0 0.0
  %394 = vmatprep.subr.mxu0 0.0
  %395 = vmatpush1.msra.mxu0 0.0
  %396 = vmatprep.subr.mxu0 0.0
  %397 = vmatpush1.msra.mxu0 0.0
  %398 = vmatprep.subr.mxu0 0.0
  %399 = vmatpush1.msra.mxu0 0.0
  %400 = vmatprep.subr.mxu0 0.0
  %401 = vmatpush1.msra.mxu0 0.0
  %402 = vmatprep.subr.mxu0 0.0
  %403 = vmatpush1.msra.mxu0 0.0
  %404 = vmatprep.subr.mxu0 0.0
  %405 = vmatpush1.msra.mxu0 0.0
  %406 = vmatprep.subr.mxu0 0.0
  %407 = vmatpush1.msra.mxu0 0.0
  %408 = vmatprep.subr.mxu0 0.0
  %409 = vmatpush1.msra.mxu0 0.0
  %410 = vmatprep.subr.mxu0 0.0
  %411 = vmatpush1.msra.mxu0 0.0
  %412 = vmatprep.subr.mxu0 0.0
  %413 = vmatpush1.msra.mxu0 0.0
  %414 = vmatprep.subr.mxu0 0.0
  %415 = vmatpush1.msra.mxu0 0.0
  %416 = vmatprep.subr.mxu0 0.0
  %417 = vmatpush1.msra.mxu0 0.0
  %418 = vmatprep.mubr.f32.mxu0 0.0
  %419 = vmatmul.mubr.f32.gmra.mrb[0].mxu0 %v352
  %v420 = vpop.f32.mrb[0].mxu0
  %v421 = vadd.f32 0.0, %v420
  %v422 = vpop.f32.mrb[0].mxu0
  %423 = vdwg.mxu0
  %v424 = vadd.f32 %v351, %v421
  %v425 = vxor.u32 %v424, 2147483648
  %v426 = vmul.f32 %v425, 1.442695
  %v427 = vpow.pop %v426
  %v428 = vadd.f32 %v427, 1.0
  %v429 = vrcp.pop %v428
  %v430 = vmul.f32 1.0, %v429
  %v431 = vtanh.pop %v424
  %v432 = vmul.f32 %v430, %v339
  %434 = vrot.lane.b32.xlu0 %v431, 120
  %v435 = vpop.permute.xlu0 %434
  %v437 = vmul.f32 %v430, %v435
  %439 = vrot.lane.b32.xlu0 %v437, 4
  %v440 = vpop.permute.xlu0 %439
  %v442 = vadd.f32 %v432, %v440
  %v443 = vtanh.pop %v442
  %445 = vrot.lane.b32.xlu0 %v443, 8
  %v446 = vpop.permute.xlu0 %445
  %v448 = vmul.f32 %v430, %v446
  %450 = vrot.lane.b32.xlu0 %v448, 116
  %v451 = vpop.permute.xlu0 %450
  %453 = vst.msk [vmem:[#allocation3 + $0x3] sm:$0x1] %vm136, %v451
  %v454 = vld [vmem:[#allocation2 + $0x4] sm:$0x1]
  %v455 = vsel %vm32, %v451, 0
  %457 = vmatprep.subr.mxu0 0.0
  %458 = vmatpush1.msra.mxu0 %v142
  %459 = vmatprep.subr.mxu0 0.0
  %460 = vmatpush1.msra.mxu0 0.0
  %461 = vmatprep.subr.mxu0 0.0
  %462 = vmatpush1.msra.mxu0 0.0
  %463 = vmatprep.subr.mxu0 0.0
  %464 = vmatpush1.msra.mxu0 0.0
  %465 = vmatprep.subr.mxu0 0.0
  %466 = vmatpush1.msra.mxu0 0.0
  %467 = vmatprep.subr.mxu0 0.0
  %468 = vmatpush1.msra.mxu0 0.0
  %469 = vmatprep.subr.mxu0 0.0
  %470 = vmatpush1.msra.mxu0 0.0
  %471 = vmatprep.subr.mxu0 0.0
  %472 = vmatpush1.msra.mxu0 0.0
  %473 = vmatprep.subr.mxu0 0.0
  %474 = vmatpush1.msra.mxu0 0.0
  %475 = vmatprep.subr.mxu0 0.0
  %476 = vmatpush1.msra.mxu0 0.0
  %477 = vmatprep.subr.mxu0 0.0
  %478 = vmatpush1.msra.mxu0 0.0
  %479 = vmatprep.subr.mxu0 0.0
  %480 = vmatpush1.msra.mxu0 0.0
  %481 = vmatprep.subr.mxu0 0.0
  %482 = vmatpush1.msra.mxu0 0.0
  %483 = vmatprep.subr.mxu0 0.0
  %484 = vmatpush1.msra.mxu0 0.0
  %485 = vmatprep.subr.mxu0 0.0
  %486 = vmatpush1.msra.mxu0 0.0
  %487 = vmatprep.subr.mxu0 0.0
  %488 = vmatpush1.msra.mxu0 0.0
  %489 = vmatprep.subr.mxu0 0.0
  %490 = vmatpush1.msra.mxu0 0.0
  %491 = vmatprep.subr.mxu0 0.0
  %492 = vmatpush1.msra.mxu0 0.0
  %493 = vmatprep.subr.mxu0 0.0
  %494 = vmatpush1.msra.mxu0 0.0
  %495 = vmatprep.subr.mxu0 0.0
  %496 = vmatpush1.msra.mxu0 0.0
  %497 = vmatprep.subr.mxu0 0.0
  %498 = vmatpush1.msra.mxu0 0.0
  %499 = vmatprep.subr.mxu0 0.0
  %500 = vmatpush1.msra.mxu0 0.0
  %501 = vmatprep.subr.mxu0 0.0
  %502 = vmatpush1.msra.mxu0 0.0
  %503 = vmatprep.subr.mxu0 0.0
  %504 = vmatpush1.msra.mxu0 0.0
  %505 = vmatprep.subr.mxu0 0.0
  %506 = vmatpush1.msra.mxu0 0.0
  %507 = vmatprep.subr.mxu0 0.0
  %508 = vmatpush1.msra.mxu0 0.0
  %509 = vmatprep.subr.mxu0 0.0
  %510 = vmatpush1.msra.mxu0 0.0
  %511 = vmatprep.subr.mxu0 0.0
  %512 = vmatpush1.msra.mxu0 0.0
  %513 = vmatprep.subr.mxu0 0.0
  %514 = vmatpush1.msra.mxu0 0.0
  %515 = vmatprep.subr.mxu0 0.0
  %516 = vmatpush1.msra.mxu0 0.0
  %517 = vmatprep.subr.mxu0 0.0
  %518 = vmatpush1.msra.mxu0 0.0
  %519 = vmatprep.subr.mxu0 0.0
  %520 = vmatpush1.msra.mxu0 0.0
  %521 = vmatprep.mubr.f32.mxu0 0.0
  %522 = vmatmul.mubr.f32.gmra.mrb[0].mxu0 %v455
  %v523 = vpop.f32.mrb[0].mxu0
  %v524 = vadd.f32 0.0, %v523
  %v525 = vpop.f32.mrb[0].mxu0
  %526 = vdwg.mxu0
  %v527 = vadd.f32 %v454, %v524
  %v528 = vxor.u32 %v527, 2147483648
  %v529 = vmul.f32 %v528, 1.442695
  %v530 = vpow.pop %v529
  %v531 = vadd.f32 %v530, 1.0
  %v532 = vrcp.pop %v531
  %v533 = vmul.f32 1.0, %v532
  %v534 = vtanh.pop %v527
  %v535 = vmul.f32 %v533, %v442
  %537 = vrot.lane.b32.xlu0 %v534, 120
  %v538 = vpop.permute.xlu0 %537
  %v540 = vmul.f32 %v533, %v538
  %542 = vrot.lane.b32.xlu0 %v540, 4
  %v543 = vpop.permute.xlu0 %542
  %v545 = vadd.f32 %v535, %v543
  %v546 = vtanh.pop %v545
  %548 = vrot.lane.b32.xlu0 %v546, 8
  %v549 = vpop.permute.xlu0 %548
  %v551 = vmul.f32 %v533, %v549
  %553 = vrot.lane.b32.xlu0 %v551, 116
  %v554 = vpop.permute.xlu0 %553
  %556 = vst.msk [vmem:[#allocation3 + $0x4] sm:$0x1] %vm136, %v554
  %v557 = vld [vmem:[#allocation2 + $0x5] sm:$0x1]
  %v558 = vsel %vm32, %v554, 0
  %560 = vmatprep.subr.mxu0 0.0
  %561 = vmatpush1.msra.mxu0 %v142
  %562 = vmatprep.subr.mxu0 0.0
  %563 = vmatpush1.msra.mxu0 0.0
  %564 = vmatprep.subr.mxu0 0.0
  %565 = vmatpush1.msra.mxu0 0.0
  %566 = vmatprep.subr.mxu0 0.0
  %567 = vmatpush1.msra.mxu0 0.0
  %568 = vmatprep.subr.mxu0 0.0
  %569 = vmatpush1.msra.mxu0 0.0
  %570 = vmatprep.subr.mxu0 0.0
  %571 = vmatpush1.msra.mxu0 0.0
  %572 = vmatprep.subr.mxu0 0.0
  %573 = vmatpush1.msra.mxu0 0.0
  %574 = vmatprep.subr.mxu0 0.0
  %575 = vmatpush1.msra.mxu0 0.0
  %576 = vmatprep.subr.mxu0 0.0
  %577 = vmatpush1.msra.mxu0 0.0
  %578 = vmatprep.subr.mxu0 0.0
  %579 = vmatpush1.msra.mxu0 0.0
  %580 = vmatprep.subr.mxu0 0.0
  %581 = vmatpush1.msra.mxu0 0.0
  %582 = vmatprep.subr.mxu0 0.0
  %583 = vmatpush1.msra.mxu0 0.0
  %584 = vmatprep.subr.mxu0 0.0
  %585 = vmatpush1.msra.mxu0 0.0
  %586 = vmatprep.subr.mxu0 0.0
  %587 = vmatpush1.msra.mxu0 0.0
  %588 = vmatprep.subr.mxu0 0.0
  %589 = vmatpush1.msra.mxu0 0.0
  %590 = vmatprep.subr.mxu0 0.0
  %591 = vmatpush1.msra.mxu0 0.0
  %592 = vmatprep.subr.mxu0 0.0
  %593 = vmatpush1.msra.mxu0 0.0
  %594 = vmatprep.subr.mxu0 0.0
  %595 = vmatpush1.msra.mxu0 0.0
  %596 = vmatprep.subr.mxu0 0.0
  %597 = vmatpush1.msra.mxu0 0.0
  %598 = vmatprep.subr.mxu0 0.0
  %599 = vmatpush1.msra.mxu0 0.0
  %600 = vmatprep.subr.mxu0 0.0
  %601 = vmatpush1.msra.mxu0 0.0
  %602 = vmatprep.subr.mxu0 0.0
  %603 = vmatpush1.msra.mxu0 0.0
  %604 = vmatprep.subr.mxu0 0.0
  %605 = vmatpush1.msra.mxu0 0.0
  %606 = vmatprep.subr.mxu0 0.0
  %607 = vmatpush1.msra.mxu0 0.0
  %608 = vmatprep.subr.mxu0 0.0
  %609 = vmatpush1.msra.mxu0 0.0
  %610 = vmatprep.subr.mxu0 0.0
  %611 = vmatpush1.msra.mxu0 0.0
  %612 = vmatprep.subr.mxu0 0.0
  %613 = vmatpush1.msra.mxu0 0.0
  %614 = vmatprep.subr.mxu0 0.0
  %615 = vmatpush1.msra.mxu0 0.0
  %616 = vmatprep.subr.mxu0 0.0
  %617 = vmatpush1.msra.mxu0 0.0
  %618 = vmatprep.subr.mxu0 0.0
  %619 = vmatpush1.msra.mxu0 0.0
  %620 = vmatprep.subr.mxu0 0.0
  %621 = vmatpush1.msra.mxu0 0.0
  %622 = vmatprep.subr.mxu0 0.0
  %623 = vmatpush1.msra.mxu0 0.0
  %624 = vmatprep.mubr.f32.mxu0 0.0
  %625 = vmatmul.mubr.f32.gmra.mrb[0].mxu0 %v558
  %v626 = vpop.f32.mrb[0].mxu0
  %v627 = vadd.f32 0.0, %v626
  %v628 = vpop.f32.mrb[0].mxu0
  %629 = vdwg.mxu0
  %v630 = vadd.f32 %v557, %v627
  %v631 = vxor.u32 %v630, 2147483648
  %v632 = vmul.f32 %v631, 1.442695
  %v633 = vpow.pop %v632
  %v634 = vadd.f32 %v633, 1.0
  %v635 = vrcp.pop %v634
  %v636 = vmul.f32 1.0, %v635
  %v637 = vtanh.pop %v630
  %v638 = vmul.f32 %v636, %v545
  %640 = vrot.lane.b32.xlu0 %v637, 120
  %v641 = vpop.permute.xlu0 %640
  %v643 = vmul.f32 %v636, %v641
  %645 = vrot.lane.b32.xlu0 %v643, 4
  %v646 = vpop.permute.xlu0 %645
  %v648 = vadd.f32 %v638, %v646
  %v649 = vtanh.pop %v648
  %651 = vrot.lane.b32.xlu0 %v649, 8
  %v652 = vpop.permute.xlu0 %651
  %v654 = vmul.f32 %v636, %v652
  %656 = vrot.lane.b32.xlu0 %v654, 116
  %v657 = vpop.permute.xlu0 %656
  %659 = vst.msk [vmem:[#allocation3 + $0x5] sm:$0x1] %vm136, %v657
  %v660 = vld [vmem:[#allocation2 + $0x6] sm:$0x1]
  %v661 = vsel %vm32, %v657, 0
  %663 = vmatprep.subr.mxu0 0.0
  %664 = vmatpush1.msra.mxu0 %v142
  %665 = vmatprep.subr.mxu0 0.0
  %666 = vmatpush1.msra.mxu0 0.0
  %667 = vmatprep.subr.mxu0 0.0
  %668 = vmatpush1.msra.mxu0 0.0
  %669 = vmatprep.subr.mxu0 0.0
  %670 = vmatpush1.msra.mxu0 0.0
  %671 = vmatprep.subr.mxu0 0.0
  %672 = vmatpush1.msra.mxu0 0.0
  %673 = vmatprep.subr.mxu0 0.0
  %674 = vmatpush1.msra.mxu0 0.0
  %675 = vmatprep.subr.mxu0 0.0
  %676 = vmatpush1.msra.mxu0 0.0
  %677 = vmatprep.subr.mxu0 0.0
  %678 = vmatpush1.msra.mxu0 0.0
  %679 = vmatprep.subr.mxu0 0.0
  %680 = vmatpush1.msra.mxu0 0.0
  %681 = vmatprep.subr.mxu0 0.0
  %682 = vmatpush1.msra.mxu0 0.0
  %683 = vmatprep.subr.mxu0 0.0
  %684 = vmatpush1.msra.mxu0 0.0
  %685 = vmatprep.subr.mxu0 0.0
  %686 = vmatpush1.msra.mxu0 0.0
  %687 = vmatprep.subr.mxu0 0.0
  %688 = vmatpush1.msra.mxu0 0.0
  %689 = vmatprep.subr.mxu0 0.0
  %690 = vmatpush1.msra.mxu0 0.0
  %691 = vmatprep.subr.mxu0 0.0
  %692 = vmatpush1.msra.mxu0 0.0
  %693 = vmatprep.subr.mxu0 0.0
  %694 = vmatpush1.msra.mxu0 0.0
  %695 = vmatprep.subr.mxu0 0.0
  %696 = vmatpush1.msra.mxu0 0.0
  %697 = vmatprep.subr.mxu0 0.0
  %698 = vmatpush1.msra.mxu0 0.0
  %699 = vmatprep.subr.mxu0 0.0
  %700 = vmatpush1.msra.mxu0 0.0
  %701 = vmatprep.subr.mxu0 0.0
  %702 = vmatpush1.msra.mxu0 0.0
  %703 = vmatprep.subr.mxu0 0.0
  %704 = vmatpush1.msra.mxu0 0.0
  %705 = vmatprep.subr.mxu0 0.0
  %706 = vmatpush1.msra.mxu0 0.0
  %707 = vmatprep.subr.mxu0 0.0
  %708 = vmatpush1.msra.mxu0 0.0
  %709 = vmatprep.subr.mxu0 0.0
  %710 = vmatpush1.msra.mxu0 0.0
  %711 = vmatprep.subr.mxu0 0.0
  %712 = vmatpush1.msra.mxu0 0.0
  %713 = vmatprep.subr.mxu0 0.0
  %714 = vmatpush1.msra.mxu0 0.0
  %715 = vmatprep.subr.mxu0 0.0
  %716 = vmatpush1.msra.mxu0 0.0
  %717 = vmatprep.subr.mxu0 0.0
  %718 = vmatpush1.msra.mxu0 0.0
  %719 = vmatprep.subr.mxu0 0.0
  %720 = vmatpush1.msra.mxu0 0.0
  %721 = vmatprep.subr.mxu0 0.0
  %722 = vmatpush1.msra.mxu0 0.0
  %723 = vmatprep.subr.mxu0 0.0
  %724 = vmatpush1.msra.mxu0 0.0
  %725 = vmatprep.subr.mxu0 0.0
  %726 = vmatpush1.msra.mxu0 0.0
  %727 = vmatprep.mubr.f32.mxu0 0.0
  %728 = vmatmul.mubr.f32.gmra.mrb[0].mxu0 %v661
  %v729 = vpop.f32.mrb[0].mxu0
  %v730 = vadd.f32 0.0, %v729
  %v731 = vpop.f32.mrb[0].mxu0
  %732 = vdwg.mxu0
  %v733 = vadd.f32 %v660, %v730
  %v734 = vxor.u32 %v733, 2147483648
  %v735 = vmul.f32 %v734, 1.442695
  %v736 = vpow.pop %v735
  %v737 = vadd.f32 %v736, 1.0
  %v738 = vrcp.pop %v737
  %v739 = vmul.f32 1.0, %v738
  %v740 = vtanh.pop %v733
  %v741 = vmul.f32 %v739, %v648
  %743 = vrot.lane.b32.xlu0 %v740, 120
  %v744 = vpop.permute.xlu0 %743
  %v746 = vmul.f32 %v739, %v744
  %748 = vrot.lane.b32.xlu0 %v746, 4
  %v749 = vpop.permute.xlu0 %748
  %v751 = vadd.f32 %v741, %v749
  %v752 = vtanh.pop %v751
  %754 = vrot.lane.b32.xlu0 %v752, 8
  %v755 = vpop.permute.xlu0 %754
  %v757 = vmul.f32 %v739, %v755
  %759 = vrot.lane.b32.xlu0 %v757, 116
  %v760 = vpop.permute.xlu0 %759
  %762 = vst.msk [vmem:[#allocation3 + $0x6] sm:$0x1] %vm136, %v760
  %v763 = vld [vmem:[#allocation2 + $0x7] sm:$0x1]
  %v764 = vsel %vm32, %v760, 0
  %766 = vmatprep.subr.mxu0 0.0
  %767 = vmatpush1.msra.mxu0 %v142
  %768 = vmatprep.subr.mxu0 0.0
  %769 = vmatpush1.msra.mxu0 0.0
  %770 = vmatprep.subr.mxu0 0.0
  %771 = vmatpush1.msra.mxu0 0.0
  %772 = vmatprep.subr.mxu0 0.0
  %773 = vmatpush1.msra.mxu0 0.0
  %774 = vmatprep.subr.mxu0 0.0
  %775 = vmatpush1.msra.mxu0 0.0
  %776 = vmatprep.subr.mxu0 0.0
  %777 = vmatpush1.msra.mxu0 0.0
  %778 = vmatprep.subr.mxu0 0.0
  %779 = vmatpush1.msra.mxu0 0.0
  %780 = vmatprep.subr.mxu0 0.0
  %781 = vmatpush1.msra.mxu0 0.0
  %782 = vmatprep.subr.mxu0 0.0
  %783 = vmatpush1.msra.mxu0 0.0
  %784 = vmatprep.subr.mxu0 0.0
  %785 = vmatpush1.msra.mxu0 0.0
  %786 = vmatprep.subr.mxu0 0.0
  %787 = vmatpush1.msra.mxu0 0.0
  %788 = vmatprep.subr.mxu0 0.0
  %789 = vmatpush1.msra.mxu0 0.0
  %790 = vmatprep.subr.mxu0 0.0
  %791 = vmatpush1.msra.mxu0 0.0
  %792 = vmatprep.subr.mxu0 0.0
  %793 = vmatpush1.msra.mxu0 0.0
  %794 = vmatprep.subr.mxu0 0.0
  %795 = vmatpush1.msra.mxu0 0.0
  %796 = vmatprep.subr.mxu0 0.0
  %797 = vmatpush1.msra.mxu0 0.0
  %798 = vmatprep.subr.mxu0 0.0
  %799 = vmatpush1.msra.mxu0 0.0
  %800 = vmatprep.subr.mxu0 0.0
  %801 = vmatpush1.msra.mxu0 0.0
  %802 = vmatprep.subr.mxu0 0.0
  %803 = vmatpush1.msra.mxu0 0.0
  %804 = vmatprep.subr.mxu0 0.0
  %805 = vmatpush1.msra.mxu0 0.0
  %806 = vmatprep.subr.mxu0 0.0
  %807 = vmatpush1.msra.mxu0 0.0
  %808 = vmatprep.subr.mxu0 0.0
  %809 = vmatpush1.msra.mxu0 0.0
  %810 = vmatprep.subr.mxu0 0.0
  %811 = vmatpush1.msra.mxu0 0.0
  %812 = vmatprep.subr.mxu0 0.0
  %813 = vmatpush1.msra.mxu0 0.0
  %814 = vmatprep.subr.mxu0 0.0
  %815 = vmatpush1.msra.mxu0 0.0
  %816 = vmatprep.subr.mxu0 0.0
  %817 = vmatpush1.msra.mxu0 0.0
  %818 = vmatprep.subr.mxu0 0.0
  %819 = vmatpush1.msra.mxu0 0.0
  %820 = vmatprep.subr.mxu0 0.0
  %821 = vmatpush1.msra.mxu0 0.0
  %822 = vmatprep.subr.mxu0 0.0
  %823 = vmatpush1.msra.mxu0 0.0
  %824 = vmatprep.subr.mxu0 0.0
  %825 = vmatpush1.msra.mxu0 0.0
  %826 = vmatprep.subr.mxu0 0.0
  %827 = vmatpush1.msra.mxu0 0.0
  %828 = vmatprep.subr.mxu0 0.0
  %829 = vmatpush1.msra.mxu0 0.0
  %830 = vmatprep.mubr.f32.mxu0 0.0
  %831 = vmatmul.mubr.f32.gmra.mrb[0].mxu0 %v764
  %v832 = vpop.f32.mrb[0].mxu0
  %v833 = vadd.f32 0.0, %v832
  %v834 = vpop.f32.mrb[0].mxu0
  %835 = vdwg.mxu0
  %v836 = vadd.f32 %v763, %v833
  %v837 = vxor.u32 %v836, 2147483648
  %v838 = vmul.f32 %v837, 1.442695
  %v839 = vpow.pop %v838
  %v840 = vadd.f32 %v839, 1.0
  %v841 = vrcp.pop %v840
  %v842 = vmul.f32 1.0, %v841
  %v843 = vtanh.pop %v836
  %v844 = vmul.f32 %v842, %v751
  %846 = vrot.lane.b32.xlu0 %v843, 120
  %v847 = vpop.permute.xlu0 %846
  %v849 = vmul.f32 %v842, %v847
  %851 = vrot.lane.b32.xlu0 %v849, 4
  %v852 = vpop.permute.xlu0 %851
  %v854 = vadd.f32 %v844, %v852
  %v855 = vtanh.pop %v854
  %857 = vrot.lane.b32.xlu0 %v855, 8
  %v858 = vpop.permute.xlu0 %857
  %v860 = vmul.f32 %v842, %v858
  %862 = vrot.lane.b32.xlu0 %v860, 116
  %v863 = vpop.permute.xlu0 %862
  %865 = vst.msk [vmem:[#allocation3 + $0x7] sm:$0x1] %vm136, %v863
  %v866 = vld [vmem:[#allocation3] sm:$0xff]
  %v867 = vld [vmem:[%s4] sm:$0xf]
  %v868 = vld [vmem:[%s5] sm:$0x1]
  %v870 = vlaneseq
  %v871 = vshrl.u32 %v870, 7
  %v872 = vsub.s32 0, %v871
  %v873 = vrot.slane %v868, %v872
  %v876 = vsel %vm32, %v866, 0
  %v879 = vsel %vm36, %v867, 0
  %881 = vmatprep.subr.mxu0 0.0
  %882 = vmatpush1.msra.mxu0 %v879
  %883 = vmatprep.subr.mxu0 0.0
  %884 = vmatpush1.msra.mxu0 0.0
  %885 = vmatprep.subr.mxu0 0.0
  %886 = vmatpush1.msra.mxu0 0.0
  %887 = vmatprep.subr.mxu0 0.0
  %888 = vmatpush1.msra.mxu0 0.0
  %889 = vmatprep.subr.mxu0 0.0
  %890 = vmatpush1.msra.mxu0 0.0
  %891 = vmatprep.subr.mxu0 0.0
  %892 = vmatpush1.msra.mxu0 0.0
  %893 = vmatprep.subr.mxu0 0.0
  %894 = vmatpush1.msra.mxu0 0.0
  %895 = vmatprep.subr.mxu0 0.0
  %896 = vmatpush1.msra.mxu0 0.0
  %897 = vmatprep.subr.mxu0 0.0
  %898 = vmatpush1.msra.mxu0 0.0
  %899 = vmatprep.subr.mxu0 0.0
  %900 = vmatpush1.msra.mxu0 0.0
  %901 = vmatprep.subr.mxu0 0.0
  %902 = vmatpush1.msra.mxu0 0.0
  %903 = vmatprep.subr.mxu0 0.0
  %904 = vmatpush1.msra.mxu0 0.0
  %905 = vmatprep.subr.mxu0 0.0
  %906 = vmatpush1.msra.mxu0 0.0
  %907 = vmatprep.subr.mxu0 0.0
  %908 = vmatpush1.msra.mxu0 0.0
  %909 = vmatprep.subr.mxu0 0.0
  %910 = vmatpush1.msra.mxu0 0.0
  %911 = vmatprep.subr.mxu0 0.0
  %912 = vmatpush1.msra.mxu0 0.0
  %913 = vmatprep.subr.mxu0 0.0
  %914 = vmatpush1.msra.mxu0 0.0
  %915 = vmatprep.subr.mxu0 0.0
  %916 = vmatpush1.msra.mxu0 0.0
  %917 = vmatprep.subr.mxu0 0.0
  %918 = vmatpush1.msra.mxu0 0.0
  %919 = vmatprep.subr.mxu0 0.0
  %920 = vmatpush1.msra.mxu0 0.0
  %921 = vmatprep.subr.mxu0 0.0
  %922 = vmatpush1.msra.mxu0 0.0
  %923 = vmatprep.subr.mxu0 0.0
  %924 = vmatpush1.msra.mxu0 0.0
  %925 = vmatprep.subr.mxu0 0.0
  %926 = vmatpush1.msra.mxu0 0.0
  %927 = vmatprep.subr.mxu0 0.0
  %928 = vmatpush1.msra.mxu0 0.0
  %929 = vmatprep.subr.mxu0 0.0
  %930 = vmatpush1.msra.mxu0 0.0
  %931 = vmatprep.subr.mxu0 0.0
  %932 = vmatpush1.msra.mxu0 0.0
  %933 = vmatprep.subr.mxu0 0.0
  %934 = vmatpush1.msra.mxu0 0.0
  %935 = vmatprep.subr.mxu0 0.0
  %936 = vmatpush1.msra.mxu0 0.0
  %937 = vmatprep.subr.mxu0 0.0
  %938 = vmatpush1.msra.mxu0 0.0
  %939 = vmatprep.subr.mxu0 0.0
  %940 = vmatpush1.msra.mxu0 0.0
  %941 = vmatprep.subr.mxu0 0.0
  %942 = vmatpush1.msra.mxu0 0.0
  %943 = vmatprep.subr.mxu0 0.0
  %944 = vmatpush1.msra.mxu0 0.0
  %945 = vmatprep.mubr.f32.mxu0 0.0
  %946 = vmatmul.mubr.f32.gmra.mrb[0].mxu0 %v876
  %v947 = vpop.f32.mrb[0].mxu0
  %v948 = vadd.f32 %v873, %v947
  %v949 = vpop.f32.mrb[0].mxu0
  %950 = vdwg.mxu0
  %951 = vst.msk [vmem:[%s6] sm:$0xff] %vm32, %v948
  // Predicated region
  $region26: #{tpu_custom_call.1} parent=0 // pred_check
    _
  $region27: #{tpu_custom_call.1} parent=0 // pred_check_branch
    %953 = sbr.rel (0) target = $region29
  $region28: #{tpu_custom_call.1} parent=0 // pred_region
    _
  $region29: #{tpu_custom_call.1} parent=0 // pred_fallthru
    _
  // Predicated region
  $region30: #{tpu_custom_call.1} parent=0 // pred_check
    _
  $region31: #{tpu_custom_call.1} parent=0 // pred_check_branch
    %955 = sbr.rel (0) target = $region33
  $region32: #{tpu_custom_call.1} parent=0 // pred_region
    _
  $region33: #{tpu_custom_call.1} parent=0 // pred_fallthru
    _

</llo_original>
